<compile_context>
chip_gen: v7x
topology: tpu7x:2x2x1
jax: 0.10.0
libtpu: 0.0.40
codegen_flags: <defaults>
</compile_context>

<pallas_src>
import numpy as np
import jax
import jax.numpy as jnp
from jax.experimental import pallas as pl
from jax.experimental.pallas import tpu as pltpu


# ---------------------------------------------------------------------------
# sin(2π·r) polynomial (r in turns, |r| ≤ 0.5):  sin(2πr) ≈ r · q(r²)
# q fitted at Chebyshev nodes on r² ∈ [0, 0.25]; abs error ≲ 1e-6.
# ---------------------------------------------------------------------------
def _sin2pi_turn_coeffs(deg=5):
    k = np.arange(deg + 1, dtype=np.float64)
    y = np.cos((2.0 * k + 1.0) * np.pi / (2.0 * (deg + 1.0)))     # Chebyshev nodes in (-1, 1)
    v = 0.5 * (y + 1.0)                                           # v = 4·u ∈ (0, 1)  (well conditioned)
    u = 0.25 * v                                                  # u = r² ∈ (0, 0.25)
    g = 2.0 * np.pi * np.sinc(2.0 * np.sqrt(u))                   # sin(2π√u)/√u
    cv = np.polynomial.polynomial.polyfit(v, g, deg)              # ascending powers of v (interpolation)
    # convert coefficients from v = 4u back to u
    return [float(cv[i] * (4.0 ** i)) for i in range(deg + 1)]


def _make_kernel(coefs):
    c = [float(v) for v in coefs]

    def kernel(x_ref, w_ref, a_ref, p_ref, out_ref):
        # x_ref  : (TILE_N, dims)  VMEM   flattened coordinates
        # w_ref  : (dims, E)       VMEM   [bvalsᵀ | bvalsᵀ]   (turns, no 2π)
        # a_ref  : (1, E)          VMEM   [avals | avals]
        # p_ref  : (1, E)          VMEM   [0 … 0 | 0.25 … 0.25]  (turns)
        # out_ref: (TILE_N, E)     VMEM
        x = x_ref[...]
        w = w_ref[...]
        # Projection in "turns": dims is tiny (2) → unrolled VPU broadcast-FMAs
        # (exact f32; XLU lane-broadcasts ride a free slot).
        t = p_ref[...] + x[:, 0:1] * w[0:1, :]
        for d in range(1, x.shape[1]):
            t = t + x[:, d:d + 1] * w[d:d + 1, :]
        # Exact period reduction to r ∈ [-0.5, 0.5)  (2 VPU ops, no generic sin).
        r = t - jnp.floor(t + 0.5)
        u = r * r
        # Horner evaluation of q(u); constants are vector immediates.
        q = u * c[-1] + c[-2]
        for ck in c[-3::-1]:
            q = q * u + ck
        out_ref[...] = (a_ref[...] * (r * q)).astype(out_ref.dtype)

    return kernel


# ---------------------------------------------------------------------------
# Tiling: ≥2 grid steps (v7x dual-TC), multiples of 8 rows, prefer divisors of N.
# ---------------------------------------------------------------------------
def _choose_tiling(N, tile_n):
    pad8 = ((N + 7) // 8) * 8
    tile = max(8, min(int(tile_n), pad8))
    tile -= tile % 8
    # Guarantee ≥2 grid steps when there is enough work, so the "parallel"
    # axis actually shards across both TensorCores on v7x.
    if tile >= pad8 and pad8 > 8:
        tile = max(8, ((pad8 // 2 + 7) // 8) * 8)
    # Prefer a tile that divides N exactly: skips jnp.pad of x and the extra
    # full-size HBM copy from slicing the padded output.
    if N % 8 == 0:
        t = tile
        while t >= max(8, tile // 2):
            if N % t == 0:
                return t, N // t, N
            t -= 8
    n_tiles = -(-N // tile)  # cdiv
    return tile, n_tiles, n_tiles * tile


# ---------------------------------------------------------------------------
# Wrapper
# ---------------------------------------------------------------------------
def ff_positional_encoding(x, bvals, avals, *, tile_n=4096):
    """x: (B, S, dims) f32.  bvals: (E/2, dims).  avals: (E/2,).  Returns (B, S, E) f32."""
    B, S, dims = x.shape
    half, dims_b = bvals.shape
    assert dims == dims_b
    E = 2 * half
    N = B * S

    # Lane-dense constants over E.  Weights stay in "turns" (no 2π folded in);
    # the cos half is sin shifted by 0.25 turns.
    w = jnp.asarray(bvals, jnp.float32).T                              # (dims, half)
    w_full = jnp.concatenate([w, w], axis=1)                           # (dims, E)
    a_half = jnp.asarray(avals, jnp.float32)
    a_full = jnp.concatenate([a_half, a_half]).reshape(1, E)           # (1, E)
    phase = jnp.concatenate(
        [jnp.zeros((half,), jnp.float32),
         jnp.full((half,), 0.25, jnp.float32)]).reshape(1, E)          # (1, E) turns

    x_flat = jnp.asarray(x, jnp.float32).reshape(N, dims)

    tile, n_tiles, N_pad = _choose_tiling(N, tile_n)
    if N_pad != N:
        x_flat = jnp.pad(x_flat, ((0, N_pad - N), (0, 0)))

    kernel = _make_kernel(_sin2pi_turn_coeffs())

    # VMEM budget per step (double-buffered): x tile lane-pads to (tile, 128)
    # → 512·tile B, out tile 512·tile B  ⇒ ≈ 2 KiB·tile total; tile=4096 ≈ 8 MiB.
    out_flat = pl.pallas_call(
        kernel,
        out_shape=jax.ShapeDtypeStruct((N_pad, E), jnp.float32),
        grid_spec=pltpu.PrefetchScalarGridSpec(
            num_scalar_prefetch=0,
            grid=(n_tiles,),
            in_specs=[
                pl.BlockSpec((tile, dims), lambda i: (i, 0)),
                pl.BlockSpec((dims, E), lambda i: (0, 0)),
                pl.BlockSpec((1, E), lambda i: (0, 0)),
                pl.BlockSpec((1, E), lambda i: (0, 0)),
            ],
            out_specs=pl.BlockSpec((tile, E), lambda i: (i, 0)),
        ),
        compiler_params=pltpu.CompilerParams(
            dimension_semantics=("parallel",),
            vmem_limit_bytes=32 * 1024 * 1024),
    )(x_flat, w_full, a_full, phase)

    if N_pad != N:
        out_flat = out_flat[:N]
    return out_flat.reshape(B, S, E)


if __name__ == "__main__":
    # Module hyper-parameters (gaussian=True branch): embedding_size, scale, dims
    embedding_size = 128
    scale = 10.0
    dims = 2

    key = jax.random.PRNGKey(0)
    k_b, k_x = jax.random.split(key)

    # Deterministic parameter init (bvals ~ N(0,1)*scale, avals = ones)
    bvals = jax.random.normal(k_b, (embedding_size // 2, dims), dtype=jnp.float32) * scale
    avals = jnp.ones((embedding_size // 2,), dtype=jnp.float32)

    # Small example input: batch=2, seq=64 coordinate pairs in [0, 1)
    B, S = 2, 64
    x = jax.random.uniform(k_x, (B, S, dims), dtype=jnp.float32)

    out = jax.block_until_ready(ff_positional_encoding(x, bvals, avals))
    assert out.shape == (B, S, embedding_size)

    # float64 numpy reference (keeps the check independent of TPU default
    # matmul precision).  Kernel error budget: f32 rounding of the ~tens-of-turns
    # projection (~5e-5 after 2π) + polynomial fit (~1e-6).
    xn = np.asarray(x, np.float64)
    bn = np.asarray(bvals, np.float64)
    an = np.asarray(avals, np.float64)
    proj = 2.0 * np.pi * np.einsum("bsd,hd->bsh", xn, bn)
    ref = np.concatenate([an * np.sin(proj), an * np.cos(proj)], axis=-1)
    np.testing.assert_allclose(np.asarray(out, np.float64), ref, rtol=1e-4, atol=2e-4)

    print("KERNEL_OK")
</pallas_src>

<mosaic_0001>
module attributes {stable_mosaic.version = 11 : i64} {
  func.func @kernel(%arg0: i32, %arg1: memref<64x2xf32, #tpu.memory_space<vmem>>, %arg2: memref<2x128xf32, #tpu.memory_space<vmem>>, %arg3: memref<1x128xf32, #tpu.memory_space<vmem>>, %arg4: memref<1x128xf32, #tpu.memory_space<vmem>>, %arg5: memref<64x128xf32, #tpu.memory_space<vmem>>) attributes {dimension_semantics = [#tpu.dimension_semantics<parallel>], iteration_bounds = array<i64: 2>, scalar_prefetch = 0 : i64, scratch_operands = 0 : i64, tpu.core_type = #tpu.core_type<tc>, window_params = [{transform_indices = @transform_0, window_bounds = array<i64: 64, 2>}, {pipeline_mode = #tpu.pipeline_mode<synchronous>, transform_indices = @transform_1, window_bounds = array<i64: 2, 128>}, {pipeline_mode = #tpu.pipeline_mode<synchronous>, transform_indices = @transform_2, window_bounds = array<i64: 1, 128>}, {pipeline_mode = #tpu.pipeline_mode<synchronous>, transform_indices = @transform_3, window_bounds = array<i64: 1, 128>}, {transform_indices = @transform_4, window_bounds = array<i64: 64, 128>}]} {
    %c0 = arith.constant 0 : index
    %c0_0 = arith.constant 0 : index
    %0 = vector.load %arg1[%c0, %c0_0] : memref<64x2xf32, #tpu.memory_space<vmem>>, vector<64x2xf32>
    %c0_1 = arith.constant 0 : index
    %c0_2 = arith.constant 0 : index
    %1 = vector.load %arg2[%c0_1, %c0_2] : memref<2x128xf32, #tpu.memory_space<vmem>>, vector<2x128xf32>
    %c0_3 = arith.constant 0 : index
    %c0_4 = arith.constant 0 : index
    %2 = vector.load %arg4[%c0_3, %c0_4] : memref<1x128xf32, #tpu.memory_space<vmem>>, vector<1x128xf32>
    %3 = vector.extract_strided_slice %0 {offsets = [0, 0], sizes = [64, 1], strides = [1, 1]} : vector<64x2xf32> to vector<64x1xf32>
    %4 = vector.extract_strided_slice %1 {offsets = [0, 0], sizes = [1, 128], strides = [1, 1]} : vector<2x128xf32> to vector<1x128xf32>
    %5 = vector.broadcast %3 : vector<64x1xf32> to vector<64x128xf32>
    %6 = vector.broadcast %4 : vector<1x128xf32> to vector<64x128xf32>
    %7 = arith.mulf %5, %6 : vector<64x128xf32>
    %8 = vector.broadcast %2 : vector<1x128xf32> to vector<64x128xf32>
    %9 = arith.addf %8, %7 : vector<64x128xf32>
    %10 = vector.extract_strided_slice %0 {offsets = [0, 1], sizes = [64, 1], strides = [1, 1]} : vector<64x2xf32> to vector<64x1xf32>
    %11 = vector.extract_strided_slice %1 {offsets = [1, 0], sizes = [1, 128], strides = [1, 1]} : vector<2x128xf32> to vector<1x128xf32>
    %12 = vector.broadcast %10 : vector<64x1xf32> to vector<64x128xf32>
    %13 = vector.broadcast %11 : vector<1x128xf32> to vector<64x128xf32>
    %14 = arith.mulf %12, %13 : vector<64x128xf32>
    %15 = arith.addf %9, %14 : vector<64x128xf32>
    %cst = arith.constant 5.000000e-01 : f32
    %16 = vector.broadcast %cst : f32 to vector<64x128xf32>
    %17 = arith.addf %15, %16 : vector<64x128xf32>
    %18 = math.floor %17 : vector<64x128xf32>
    %19 = arith.subf %15, %18 : vector<64x128xf32>
    %20 = arith.mulf %19, %19 : vector<64x128xf32>
    %cst_5 = arith.constant -12.4688187 : f32
    %21 = vector.broadcast %cst_5 : f32 to vector<64x128xf32>
    %22 = arith.mulf %20, %21 : vector<64x128xf32>
    %cst_6 = arith.constant 41.3413658 : f32
    %23 = vector.broadcast %cst_6 : f32 to vector<64x128xf32>
    %24 = arith.addf %22, %23 : vector<64x128xf32>
    %25 = arith.mulf %24, %20 : vector<64x128xf32>
    %cst_7 = arith.constant -76.6141434 : f32
    %26 = vector.broadcast %cst_7 : f32 to vector<64x128xf32>
    %27 = arith.addf %25, %26 : vector<64x128xf32>
    %28 = arith.mulf %27, %20 : vector<64x128xf32>
    %cst_8 = arith.constant 81.5999146 : f32
    %29 = vector.broadcast %cst_8 : f32 to vector<64x128xf32>
    %30 = arith.addf %28, %29 : vector<64x128xf32>
    %31 = arith.mulf %30, %20 : vector<64x128xf32>
    %cst_9 = arith.constant -41.3415871 : f32
    %32 = vector.broadcast %cst_9 : f32 to vector<64x128xf32>
    %33 = arith.addf %31, %32 : vector<64x128xf32>
    %34 = arith.mulf %33, %20 : vector<64x128xf32>
    %cst_10 = arith.constant 6.283185 : f32
    %35 = vector.broadcast %cst_10 : f32 to vector<64x128xf32>
    %36 = arith.addf %34, %35 : vector<64x128xf32>
    %c0_11 = arith.constant 0 : index
    %c0_12 = arith.constant 0 : index
    %37 = vector.load %arg3[%c0_11, %c0_12] : memref<1x128xf32, #tpu.memory_space<vmem>>, vector<1x128xf32>
    %38 = arith.mulf %19, %36 : vector<64x128xf32>
    %39 = vector.broadcast %37 : vector<1x128xf32> to vector<64x128xf32>
    %40 = arith.mulf %39, %38 : vector<64x128xf32>
    %c0_13 = arith.constant 0 : index
    %c0_14 = arith.constant 0 : index
    %41 = vector.load %arg5[%c0_13, %c0_14] : memref<64x128xf32, #tpu.memory_space<vmem>>, vector<64x128xf32>
    tpu.vector_store %arg5[%c0_13, %c0_14], %40 {strides = array<i32>} : memref<64x128xf32, #tpu.memory_space<vmem>>, vector<64x128xf32>,
    return
  }
  func.func @transform_0(%arg0: i32) -> (i32, i32) {
    %c0_i32 = arith.constant 0 : i32
    %c0_i32_0 = arith.constant 0 : i32
    return %arg0, %c0_i32 : i32, i32
  }
  func.func @transform_1(%arg0: i32) -> (i32, i32) {
    %c0_i32 = arith.constant 0 : i32
    %c0_i32_0 = arith.constant 0 : i32
    %c0_i32_1 = arith.constant 0 : i32
    return %c0_i32, %c0_i32_0 : i32, i32
  }
  func.func @transform_2(%arg0: i32) -> (i32, i32) {
    %c0_i32 = arith.constant 0 : i32
    %c0_i32_0 = arith.constant 0 : i32
    %c0_i32_1 = arith.constant 0 : i32
    return %c0_i32, %c0_i32_0 : i32, i32
  }
  func.func @transform_3(%arg0: i32) -> (i32, i32) {
    %c0_i32 = arith.constant 0 : i32
    %c0_i32_0 = arith.constant 0 : i32
    %c0_i32_1 = arith.constant 0 : i32
    return %c0_i32, %c0_i32_0 : i32, i32
  }
  func.func @transform_4(%arg0: i32) -> (i32, i32) {
    %c0_i32 = arith.constant 0 : i32
    %c0_i32_0 = arith.constant 0 : i32
    return %arg0, %c0_i32 : i32, i32
  }
}

</mosaic_0001>

<llo_original>
// kernel: tpu_custom_call.1
$region0: #{tpu_custom_call.1}
  #allocation0 [shape = 'u32[]', space=smem, size = 0x4, offset = 0x4, fixed_abs, tag = 'smem constant byte address 0x4 - core index']
  #allocation1 [shape = 'u32[144,128]{1,0:T(1,128)}', space=vmem, size = 0x12000, scoped, tag = 'internal scratch']
  %s0 = inlined_call_operand.vmem [shape: f32[128,2], index: 0, kind: input, shape index: {}]
  %s1 = inlined_call_operand.vmem [shape: f32[2,128], index: 1, kind: input, shape index: {}]
  %s2 = inlined_call_operand.vmem [shape: f32[1,128], index: 2, kind: input, shape index: {}]
  %s3 = inlined_call_operand.vmem [shape: f32[1,128], index: 3, kind: input, shape index: {}]
  %s4 = inlined_call_operand.hbm [shape: f32[128,128], index: 4, kind: output, shape index: {}]
  %s5 = sld [smem:[#allocation0]]
  $region49: #{tpu_custom_call.1} parent=0
    _
  %s7 = ssub.s32 1, %s5
  %s8 = scalar_select 0, %s7, %s5
  $region1: #{tpu_custom_call.1} parent=0
    #allocation2 [shape = 'u8[65536]{0}', space=vmem, size = 0x10000, scoped, tag = 'output window, operand 0']
    #allocation3 [shape = 's32[2]{0}', space=sflag, size = 0x8, scoped, tag = 'scoped memory for tpu_custom_call.1']
    %9 = vsyncpa [#allocation3], 0
    %s10 = scalar_lea.sflag [#allocation3], 1
    %11 = vsyncpa %s10, 0
    loop: start=0, step=1, limit=4
    $region2: #{tpu_custom_call.1} parent=1 // loop_pre_header
      _
    $region3: #{tpu_custom_call.1} parent=1 // loop_header
      %s13 = sphi 0, %s17
      %p14 = scmp.ge.s32.totalorder %s13, 4
      %s23 = sphi 0, %s25
      %s26 = sphi 0, %s23
      %s27 = sphi 0, %s26
      %s43 = sphi 0, %s27
      %s47 = sphi 0, %s47
      %s49 = sphi 0, %s47
      %s50 = sphi 0, %s49
      %s64 = sphi 0, %s50
      %s68 = sphi 0, %s68
      %s70 = sphi 0, %s68
      %s71 = sphi 0, %s70
      %s85 = sphi 0, %s71
      %s89 = sphi 0, %s89
      %s91 = sphi 0, %s89
      %s92 = sphi 0, %s91
      %s106 = sphi 0, %s92
      %s112 = sphi 0, %s114
      %s115 = sphi 0, %s112
      %s116 = sphi 0, %s115
      %s132 = sphi 0, %s116
    $region4: #{tpu_custom_call.1} parent=1 // loop_header_branch
      %16 = sbr.rel (%p14) target = $region8
    $region5: #{tpu_custom_call.1} parent=1 // loop_body
      %s18 = ssub.s32 %s13, 1
      %s19 = ssub.s32 %s13, 2
      %s20 = sadd.s32 %s13, 1
      %s21 = ssub.s32 %s13, %s20
      %p22 = scmp.eq.s32.totalorder %s21, 0
      %s24 = sadd.s32 %s23, 1
      %s25 = scalar_select %p22, %s23, %s24
      %p28 = pneg %p22
      %p29 = scmp.eq.s32.totalorder %s13, 1
      %p30 = por %p28, %p29
      %p31 = scmp.ne.s32.totalorder %s23, %s26
      %p32 = scmp.eq.s32.totalorder %s13, 0
      %p33 = por %p31, %p32
      %p34 = scmp.ne.s32.totalorder %s23, %s26
      %p35 = scmp.eq.s32.totalorder %s18, 1
      %p36 = por %p34, %p35
      %p37 = scmp.ne.s32.totalorder %s26, %s27
      %p38 = scmp.eq.s32.totalorder %s18, 0
      %p39 = por %p37, %p38
      %p40 = scmp.ne.s32.totalorder %s26, %s27
      %p41 = scmp.eq.s32.totalorder %s19, 1
      %p42 = por %p40, %p41
      %p44 = scmp.ne.s32.totalorder %s27, %s43
      %p45 = scmp.eq.s32.totalorder %s19, 0
      %p46 = por %p44, %p45
      %s48 = sadd.s32 %s47, 1
      %p51 = scmp.eq.s32.totalorder %s13, 1
      %p52 = scmp.ne.s32.totalorder %s47, %s49
      %p53 = scmp.eq.s32.totalorder %s13, 0
      %p54 = por %p52, %p53
      %p55 = scmp.ne.s32.totalorder %s47, %s49
      %p56 = scmp.eq.s32.totalorder %s18, 1
      %p57 = por %p55, %p56
      %p58 = scmp.ne.s32.totalorder %s49, %s50
      %p59 = scmp.eq.s32.totalorder %s18, 0
      %p60 = por %p58, %p59
      %p61 = scmp.ne.s32.totalorder %s49, %s50
      %p62 = scmp.eq.s32.totalorder %s19, 1
      %p63 = por %p61, %p62
      %p65 = scmp.ne.s32.totalorder %s50, %s64
      %p66 = scmp.eq.s32.totalorder %s19, 0
      %p67 = por %p65, %p66
      %s69 = sadd.s32 %s68, 1
      %p72 = scmp.eq.s32.totalorder %s13, 1
      %p73 = scmp.ne.s32.totalorder %s68, %s70
      %p74 = scmp.eq.s32.totalorder %s13, 0
      %p75 = por %p73, %p74
      %p76 = scmp.ne.s32.totalorder %s68, %s70
      %p77 = scmp.eq.s32.totalorder %s18, 1
      %p78 = por %p76, %p77
      %p79 = scmp.ne.s32.totalorder %s70, %s71
      %p80 = scmp.eq.s32.totalorder %s18, 0
      %p81 = por %p79, %p80
      %p82 = scmp.ne.s32.totalorder %s70, %s71
      %p83 = scmp.eq.s32.totalorder %s19, 1
      %p84 = por %p82, %p83
      %p86 = scmp.ne.s32.totalorder %s71, %s85
      %p87 = scmp.eq.s32.totalorder %s19, 0
      %p88 = por %p86, %p87
      %s90 = sadd.s32 %s89, 1
      %p93 = scmp.eq.s32.totalorder %s13, 1
      %p94 = scmp.ne.s32.totalorder %s89, %s91
      %p95 = scmp.eq.s32.totalorder %s13, 0
      %p96 = por %p94, %p95
      %p97 = scmp.ne.s32.totalorder %s89, %s91
      %p98 = scmp.eq.s32.totalorder %s18, 1
      %p99 = por %p97, %p98
      %p100 = scmp.ne.s32.totalorder %s91, %s92
      %p101 = scmp.eq.s32.totalorder %s18, 0
      %p102 = por %p100, %p101
      %p103 = scmp.ne.s32.totalorder %s91, %s92
      %p104 = scmp.eq.s32.totalorder %s19, 1
      %p105 = por %p103, %p104
      %p107 = scmp.ne.s32.totalorder %s92, %s106
      %p108 = scmp.eq.s32.totalorder %s19, 0
      %p109 = por %p107, %p108
      %s110 = ssub.s32 %s13, %s20
      %p111 = scmp.eq.s32.totalorder %s110, 0
      %s113 = sadd.s32 %s112, 1
      %s114 = scalar_select %p111, %s112, %s113
      %p117 = pneg %p111
      %p118 = scmp.eq.s32.totalorder %s13, 1
      %p119 = por %p117, %p118
      %p120 = scmp.ne.s32.totalorder %s112, %s115
      %p121 = scmp.eq.s32.totalorder %s13, 0
      %p122 = por %p120, %p121
      %p123 = scmp.ne.s32.totalorder %s112, %s115
      %p124 = scmp.eq.s32.totalorder %s18, 1
      %p125 = por %p123, %p124
      %p126 = scmp.ne.s32.totalorder %s115, %s116
      %p127 = scmp.eq.s32.totalorder %s18, 0
      %p128 = por %p126, %p127
      %p129 = scmp.ne.s32.totalorder %s115, %s116
      %p130 = scmp.eq.s32.totalorder %s19, 1
      %p131 = por %p129, %p130
      %p133 = scmp.ne.s32.totalorder %s116, %s132
      %p134 = scmp.eq.s32.totalorder %s19, 0
      %p135 = por %p133, %p134
      %p136 = scmp.le.s32.totalorder 1, %s13
      %p137 = scmp.lt.s32.totalorder %s13, 3
      %p138 = pnand %p136, %p137
      %p139 = pneg %p138
      // Predicated region
      $region9: #{tpu_custom_call.1} parent=5 // pred_check
        _
      $region10: #{tpu_custom_call.1} parent=5 // pred_check_branch
        %141 = sbr.rel (%p138) target = $region12
      $region11: #{tpu_custom_call.1} parent=5 // pred_region
        %s142 = ssub.s32 %s13, 1
        // Predicated region
        $region13: #{tpu_custom_call.1} parent=11 // pred_check
          %p143 = pneg %p60
        $region14: #{tpu_custom_call.1} parent=11 // pred_check_branch
          %145 = sbr.rel (%p143) target = $region16
        $region15: #{tpu_custom_call.1} parent=11 // pred_region
          _
        $region16: #{tpu_custom_call.1} parent=11 // pred_fallthru
          _
        // Predicated region
        $region17: #{tpu_custom_call.1} parent=11 // pred_check
          %p146 = pneg %p81
        $region18: #{tpu_custom_call.1} parent=11 // pred_check_branch
          %148 = sbr.rel (%p146) target = $region20
        $region19: #{tpu_custom_call.1} parent=11 // pred_region
          _
        $region20: #{tpu_custom_call.1} parent=11 // pred_fallthru
          _
        // Predicated region
        $region21: #{tpu_custom_call.1} parent=11 // pred_check
          %p149 = pneg %p102
        $region22: #{tpu_custom_call.1} parent=11 // pred_check_branch
          %151 = sbr.rel (%p149) target = $region24
        $region23: #{tpu_custom_call.1} parent=11 // pred_region
          _
        $region24: #{tpu_custom_call.1} parent=11 // pred_fallthru
          _
      $region12: #{tpu_custom_call.1} parent=5 // pred_fallthru
        _
      %p152 = scmp.lt.s32.totalorder %s13, 2
      // Predicated region
      $region25: #{tpu_custom_call.1} parent=5 // pred_check
        %p153 = pneg %p152
      $region26: #{tpu_custom_call.1} parent=5 // pred_check_branch
        %155 = sbr.rel (%p153) target = $region28
      $region27: #{tpu_custom_call.1} parent=5 // pred_region
        // Predicated region
        $region29: #{tpu_custom_call.1} parent=27 // pred_check
          %p156 = pneg %p33
        $region30: #{tpu_custom_call.1} parent=27 // pred_check_branch
          %158 = sbr.rel (%p156) target = $region32
        $region31: #{tpu_custom_call.1} parent=27 // pred_region
          %s159 = smul.u32 8, %s13
          %p160 = scmp.lt.s32.totalorder %s159, 15
          %s161 = scalar_select %p160, %s159, 15
          %s162 = smul.addr %s161, 8
          %s163 = scalar_lea.vmem %s0, %s162
          %s164 = smul.u32 8, %s13
        $region32: #{tpu_custom_call.1} parent=27 // pred_fallthru
          _
      $region28: #{tpu_custom_call.1} parent=5 // pred_fallthru
        _
      %p165 = scmp.le.s32.totalorder 1, %s13
      %p166 = scmp.lt.s32.totalorder %s13, 3
      %p167 = pnand %p165, %p166
      %p168 = pneg %p167
      // Predicated region
      $region33: #{tpu_custom_call.1} parent=5 // pred_check
        _
      $region34: #{tpu_custom_call.1} parent=5 // pred_check_branch
        %170 = sbr.rel (%p167) target = $region36
      $region35: #{tpu_custom_call.1} parent=5 // pred_region
        %s171 = ssub.s32 %s13, 1
        %s172 = smul.u32 8, %s18
        %p173 = scmp.lt.s32.totalorder %s172, 15
        %s174 = scalar_select %p173, %s172, 15
        %s175 = smul.addr %s174, 8
        %s176 = scalar_lea.vmem %s0, %s175
        %p177 = pneg %p39
        %p178 = pneg %p36
        %p179 = pneg %p60
        %p180 = pneg %p57
        %p181 = pneg %p81
        %p182 = pneg %p78
        %p183 = pneg %p102
        %p184 = pneg %p99
        %p185 = pneg %p128
        %p186 = pneg %p125
        %s187 = sand.u32 %s115, 1
        %s188 = scalar_lea.sflag [#allocation3], %s187
        %s189 = sand.u32 %s115, 1
        %s190 = smul.addr %s189, 64
        %s191 = scalar_lea.vmem [#allocation2], %s190
        %s192 = smul.u32 8, %s18
        %p193 = scmp.lt.s32.totalorder %s192, 15
        %s194 = scalar_select %p193, %s192, 15
        %s195 = smul.addr %s194, 8
        %s196 = scalar_lea.vmem %s0, %s195
        %s197 = smul.u32 8, %s18
        %s198 = smul.u32 8, %s18
        %v199 = vld [vmem:[%s196] sm:$0xff]
        %v200 = vld [vmem:[%s196 + $0x8] sm:$0xff]
        %v201 = vld [vmem:[%s196 + $0x10] sm:$0xff]
        %v202 = vld [vmem:[%s196 + $0x18] sm:$0xff]
        %v203 = vld [vmem:[%s196 + $0x20] sm:$0xff]
        %v204 = vld [vmem:[%s196 + $0x28] sm:$0xff]
        %v205 = vld [vmem:[%s196 + $0x30] sm:$0xff]
        %v206 = vld [vmem:[%s196 + $0x38] sm:$0xff]
        %v207 = vld [vmem:[%s1] sm:$0x3]
        %v208 = vld [vmem:[%s3] sm:$0x1]
        %210 = vset.pattern.permute.xlu0 0
        %211 = vperm.xlu0 %210, %v199
        %v212 = vpop.permute.xlu0 %211
        %215 = vset.pattern.permute.xlu0 0
        %216 = vperm.xlu0 %215, %v200
        %v217 = vpop.permute.xlu0 %216
        %220 = vset.pattern.permute.xlu0 0
        %221 = vperm.xlu0 %220, %v201
        %v222 = vpop.permute.xlu0 %221
        %225 = vset.pattern.permute.xlu0 0
        %226 = vperm.xlu0 %225, %v202
        %v227 = vpop.permute.xlu0 %226
        %230 = vset.pattern.permute.xlu0 0
        %231 = vperm.xlu0 %230, %v203
        %v232 = vpop.permute.xlu0 %231
        %235 = vset.pattern.permute.xlu0 0
        %236 = vperm.xlu0 %235, %v204
        %v237 = vpop.permute.xlu0 %236
        %240 = vset.pattern.permute.xlu0 0
        %241 = vperm.xlu0 %240, %v205
        %v242 = vpop.permute.xlu0 %241
        %245 = vset.pattern.permute.xlu0 0
        %246 = vperm.xlu0 %245, %v206
        %v247 = vpop.permute.xlu0 %246
        %v249 = vlaneseq
        %v250 = vshrl.u32 %v249, 7
        %v251 = vsub.s32 0, %v250
        %v252 = vrot.slane %v207, %v251
        %v253 = vmul.f32 %v212, %v252
        %v254 = vmul.f32 %v217, %v252
        %v255 = vmul.f32 %v222, %v252
        %v256 = vmul.f32 %v227, %v252
        %v257 = vmul.f32 %v232, %v252
        %v258 = vmul.f32 %v237, %v252
        %v259 = vmul.f32 %v242, %v252
        %v260 = vmul.f32 %v247, %v252
        %v262 = vlaneseq
        %v263 = vshrl.u32 %v262, 7
        %v264 = vsub.s32 0, %v263
        %v265 = vrot.slane %v208, %v264
        %v267 = vadd.f32 %v265, %v253
        %v268 = vadd.f32 %v265, %v254
        %v269 = vadd.f32 %v265, %v255
        %v270 = vadd.f32 %v265, %v256
        %v271 = vadd.f32 %v265, %v257
        %v272 = vadd.f32 %v265, %v258
        %v273 = vadd.f32 %v265, %v259
        %v274 = vadd.f32 %v265, %v260
        %275 = vset.pattern.permute.xlu0 1
        %276 = vperm.xlu0 %275, %v199
        %v277 = vpop.permute.xlu0 %276
        %279 = vset.pattern.permute.xlu0 1
        %280 = vperm.xlu0 %279, %v200
        %v281 = vpop.permute.xlu0 %280
        %283 = vset.pattern.permute.xlu0 1
        %284 = vperm.xlu0 %283, %v201
        %v285 = vpop.permute.xlu0 %284
        %287 = vset.pattern.permute.xlu0 1
        %288 = vperm.xlu0 %287, %v202
        %v289 = vpop.permute.xlu0 %288
        %291 = vset.pattern.permute.xlu0 1
        %292 = vperm.xlu0 %291, %v203
        %v293 = vpop.permute.xlu0 %292
        %295 = vset.pattern.permute.xlu0 1
        %296 = vperm.xlu0 %295, %v204
        %v297 = vpop.permute.xlu0 %296
        %299 = vset.pattern.permute.xlu0 1
        %300 = vperm.xlu0 %299, %v205
        %v301 = vpop.permute.xlu0 %300
        %303 = vset.pattern.permute.xlu0 1
        %304 = vperm.xlu0 %303, %v206
        %v305 = vpop.permute.xlu0 %304
        %v307 = vlaneseq
        %v308 = vshrl.u32 %v307, 7
        %v309 = vsub.s32 1, %v308
        %v310 = vrot.slane %v207, %v309
        %v311 = vmul.f32 %v277, %v310
        %v312 = vmul.f32 %v281, %v310
        %v313 = vmul.f32 %v285, %v310
        %v314 = vmul.f32 %v289, %v310
        %v315 = vmul.f32 %v293, %v310
        %v316 = vmul.f32 %v297, %v310
        %v317 = vmul.f32 %v301, %v310
        %v318 = vmul.f32 %v305, %v310
        %v319 = vadd.f32 %v267, %v311
        %v320 = vadd.f32 %v268, %v312
        %v321 = vadd.f32 %v269, %v313
        %v322 = vadd.f32 %v270, %v314
        %v323 = vadd.f32 %v271, %v315
        %v324 = vadd.f32 %v272, %v316
        %v325 = vadd.f32 %v273, %v317
        %v326 = vadd.f32 %v274, %v318
        %v327 = vadd.f32 %v319, 0.5
        %v328 = vadd.f32 %v320, 0.5
        %v329 = vadd.f32 %v321, 0.5
        %v330 = vadd.f32 %v322, 0.5
        %v331 = vadd.f32 %v323, 0.5
        %v332 = vadd.f32 %v324, 0.5
        %v333 = vadd.f32 %v325, 0.5
        %v334 = vadd.f32 %v326, 0.5
        %v335 = vfloor.f32 %v327
        %v336 = vfloor.f32 %v328
        %v337 = vfloor.f32 %v329
        %v338 = vfloor.f32 %v330
        %v339 = vfloor.f32 %v331
        %v340 = vfloor.f32 %v332
        %v341 = vfloor.f32 %v333
        %v342 = vfloor.f32 %v334
        %v343 = vsub.f32 %v319, %v335
        %v344 = vsub.f32 %v320, %v336
        %v345 = vsub.f32 %v321, %v337
        %v346 = vsub.f32 %v322, %v338
        %v347 = vsub.f32 %v323, %v339
        %v348 = vsub.f32 %v324, %v340
        %v349 = vsub.f32 %v325, %v341
        %v350 = vsub.f32 %v326, %v342
        %v351 = vmul.f32 %v343, %v343
        %v352 = vmul.f32 %v344, %v344
        %v353 = vmul.f32 %v345, %v345
        %v354 = vmul.f32 %v346, %v346
        %v355 = vmul.f32 %v347, %v347
        %v356 = vmul.f32 %v348, %v348
        %v357 = vmul.f32 %v349, %v349
        %v358 = vmul.f32 %v350, %v350
        %v359 = vmul.f32 %v351, -12.468819
        %v360 = vmul.f32 %v352, -12.468819
        %v361 = vmul.f32 %v353, -12.468819
        %v362 = vmul.f32 %v354, -12.468819
        %v363 = vmul.f32 %v355, -12.468819
        %v364 = vmul.f32 %v356, -12.468819
        %v365 = vmul.f32 %v357, -12.468819
        %v366 = vmul.f32 %v358, -12.468819
        %v367 = vadd.f32 %v359, 41.341366
        %v368 = vadd.f32 %v360, 41.341366
        %v369 = vadd.f32 %v361, 41.341366
        %v370 = vadd.f32 %v362, 41.341366
        %v371 = vadd.f32 %v363, 41.341366
        %v372 = vadd.f32 %v364, 41.341366
        %v373 = vadd.f32 %v365, 41.341366
        %v374 = vadd.f32 %v366, 41.341366
        %v375 = vmul.f32 %v367, %v351
        %v376 = vmul.f32 %v368, %v352
        %v377 = vmul.f32 %v369, %v353
        %v378 = vmul.f32 %v370, %v354
        %v379 = vmul.f32 %v371, %v355
        %v380 = vmul.f32 %v372, %v356
        %v381 = vmul.f32 %v373, %v357
        %v382 = vmul.f32 %v374, %v358
        %v383 = vadd.f32 %v375, -76.61414
        %v384 = vadd.f32 %v376, -76.61414
        %v385 = vadd.f32 %v377, -76.61414
        %v386 = vadd.f32 %v378, -76.61414
        %v387 = vadd.f32 %v379, -76.61414
        %v388 = vadd.f32 %v380, -76.61414
        %v389 = vadd.f32 %v381, -76.61414
        %v390 = vadd.f32 %v382, -76.61414
        %v391 = vmul.f32 %v383, %v351
        %v392 = vmul.f32 %v384, %v352
        %v393 = vmul.f32 %v385, %v353
        %v394 = vmul.f32 %v386, %v354
        %v395 = vmul.f32 %v387, %v355
        %v396 = vmul.f32 %v388, %v356
        %v397 = vmul.f32 %v389, %v357
        %v398 = vmul.f32 %v390, %v358
        %v399 = vadd.f32 %v391, 81.599915
        %v400 = vadd.f32 %v392, 81.599915
        %v401 = vadd.f32 %v393, 81.599915
        %v402 = vadd.f32 %v394, 81.599915
        %v403 = vadd.f32 %v395, 81.599915
        %v404 = vadd.f32 %v396, 81.599915
        %v405 = vadd.f32 %v397, 81.599915
        %v406 = vadd.f32 %v398, 81.599915
        %v407 = vmul.f32 %v399, %v351
        %v408 = vmul.f32 %v400, %v352
        %v409 = vmul.f32 %v401, %v353
        %v410 = vmul.f32 %v402, %v354
        %v411 = vmul.f32 %v403, %v355
        %v412 = vmul.f32 %v404, %v356
        %v413 = vmul.f32 %v405, %v357
        %v414 = vmul.f32 %v406, %v358
        %v415 = vadd.f32 %v407, -41.341587
        %v416 = vadd.f32 %v408, -41.341587
        %v417 = vadd.f32 %v409, -41.341587
        %v418 = vadd.f32 %v410, -41.341587
        %v419 = vadd.f32 %v411, -41.341587
        %v420 = vadd.f32 %v412, -41.341587
        %v421 = vadd.f32 %v413, -41.341587
        %v422 = vadd.f32 %v414, -41.341587
        %v423 = vmul.f32 %v415, %v351
        %v424 = vmul.f32 %v416, %v352
        %v425 = vmul.f32 %v417, %v353
        %v426 = vmul.f32 %v418, %v354
        %v427 = vmul.f32 %v419, %v355
        %v428 = vmul.f32 %v420, %v356
        %v429 = vmul.f32 %v421, %v357
        %v430 = vmul.f32 %v422, %v358
        %v431 = vadd.f32 %v423, 6.283185
        %v432 = vadd.f32 %v424, 6.283185
        %v433 = vadd.f32 %v425, 6.283185
        %v434 = vadd.f32 %v426, 6.283185
        %v435 = vadd.f32 %v427, 6.283185
        %v436 = vadd.f32 %v428, 6.283185
        %v437 = vadd.f32 %v429, 6.283185
        %v438 = vadd.f32 %v430, 6.283185
        %v439 = vld [vmem:[%s2] sm:$0x1]
        %v440 = vmul.f32 %v343, %v431
        %v441 = vmul.f32 %v344, %v432
        %v442 = vmul.f32 %v345, %v433
        %v443 = vmul.f32 %v346, %v434
        %v444 = vmul.f32 %v347, %v435
        %v445 = vmul.f32 %v348, %v436
        %v446 = vmul.f32 %v349, %v437
        %v447 = vmul.f32 %v350, %v438
        %v449 = vlaneseq
        %v450 = vshrl.u32 %v449, 7
        %v451 = vsub.s32 0, %v450
        %v452 = vrot.slane %v439, %v451
        %v454 = vmul.f32 %v452, %v440
        %v455 = vmul.f32 %v452, %v441
        %v456 = vmul.f32 %v452, %v442
        %v457 = vmul.f32 %v452, %v443
        %v458 = vmul.f32 %v452, %v444
        %v459 = vmul.f32 %v452, %v445
        %v460 = vmul.f32 %v452, %v446
        %v461 = vmul.f32 %v452, %v447
        %462 = vst [vmem:[%s191] sm:$0xff] %v454
        %463 = vst [vmem:[%s191 + $0x8] sm:$0xff] %v455
        %464 = vst [vmem:[%s191 + $0x10] sm:$0xff] %v456
        %465 = vst [vmem:[%s191 + $0x18] sm:$0xff] %v457
        %466 = vst [vmem:[%s191 + $0x20] sm:$0xff] %v458
        %467 = vst [vmem:[%s191 + $0x28] sm:$0xff] %v459
        %468 = vst [vmem:[%s191 + $0x30] sm:$0xff] %v460
        %469 = vst [vmem:[%s191 + $0x38] sm:$0xff] %v461
        %s470 = sand.u32 %s115, 1
        %s471 = scalar_lea.sflag [#allocation3], %s470
        %s472 = sand.u32 %s115, 1
        %s473 = smul.addr %s472, 64
        %s474 = scalar_lea.vmem [#allocation2], %s473
        // Predicated region
        $region37: #{tpu_custom_call.1} parent=35 // pred_check
          %p475 = pneg %p125
        $region38: #{tpu_custom_call.1} parent=35 // pred_check_branch
          %477 = sbr.rel (%p475) target = $region40
        $region39: #{tpu_custom_call.1} parent=35 // pred_region
          %s478 = smul.u32 8, %s18
          %s480 = ssub.s32 1024, 1024
          %481 = vsyncadd %s471, %s480
          %s482 = smul.addr %s478, 128
          %s483 = scalar_lea.hbm %s4, %s482
          %s484 = sshll.u32 %s474, 4
          %s485 = int_to_ptr.vmem [resolvable:$true] %s484
          %490 = dma.vmem_to_hbm [thread:$0]  %s485, 1024, %s483, %s471, 128, 128, 8
        $region40: #{tpu_custom_call.1} parent=35 // pred_fallthru
          _
      $region36: #{tpu_custom_call.1} parent=5 // pred_fallthru
        _
      %p491 = scmp.le.s32.totalorder 2, %s13
      // Predicated region
      $region41: #{tpu_custom_call.1} parent=5 // pred_check
        %p492 = pneg %p491
      $region42: #{tpu_custom_call.1} parent=5 // pred_check_branch
        %494 = sbr.rel (%p492) target = $region44
      $region43: #{tpu_custom_call.1} parent=5 // pred_region
        %s495 = ssub.s32 %s13, 2
        // Predicated region
        $region45: #{tpu_custom_call.1} parent=43 // pred_check
          %p496 = pneg %p131
        $region46: #{tpu_custom_call.1} parent=43 // pred_check_branch
          %498 = sbr.rel (%p496) target = $region48
        $region47: #{tpu_custom_call.1} parent=43 // pred_region
          %s499 = sand.u32 %s116, 1
          %s500 = scalar_lea.sflag [#allocation3], %s499
          %s501 = sand.u32 %s116, 1
          %s502 = smul.addr %s501, 64
          %s503 = scalar_lea.vmem [#allocation2], %s502
          %504 = dma.done %s500, 1024
        $region48: #{tpu_custom_call.1} parent=43 // pred_fallthru
          _
      $region44: #{tpu_custom_call.1} parent=5 // pred_fallthru
        _
    $region6: #{tpu_custom_call.1} parent=1 // loop_footer
      %s17 = sadd.s32 1, %s13
    $region7: #{tpu_custom_call.1} parent=1 // loop_footer_branch
      %12 = sbr.rel target = $region3
    $region8: #{tpu_custom_call.1} parent=1 // loop_exit
      _
    %505 = vsyncpa [#allocation3], 1
    %s506 = scalar_lea.sflag [#allocation3], 1
    %507 = vsyncpa %s506, 1

</llo_original>
